<compile_context>
chip_gen: v7x
topology: tpu7x:2x2x1
jax: 0.10.0
libtpu: 0.0.40
codegen_flags: <defaults>
</compile_context>

<pallas_src>
import functools

import jax
import jax.numpy as jnp
from jax.experimental import pallas as pl
from jax.experimental.pallas import tpu as pltpu


def _round_up(v: int, m: int) -> int:
    return ((v + m - 1) // m) * m


@functools.lru_cache(maxsize=1)
def _vmem_params():
    """Generation-aware (vmem_budget_for_tiling, scoped_vmem_limit_cap) in bytes."""
    try:
        cap = int(pltpu.get_tpu_info().vmem_capacity_bytes)
    except Exception:
        cap = 64 * 2**20  # conservative fallback (v7x-class)
    if cap <= 64 * 2**20:
        # v7x: 64 MiB per TensorCore -> leave real headroom for compiler scratch.
        return 36 * 2**20, 52 * 2**20
    # v5e / v6e: 128 MiB physical VMEM (scoped default is only 16/32 MiB, so
    # the explicit limit below matters); be much more generous with tiles.
    return 80 * 2**20, 100 * 2**20


def _pick_tm(m, cin_p, h_p, cout_p, itemsize, sub, vmem_budget, tm_cap=2048):
    """Pick a batch-tile size that fits comfortably in the generation's VMEM."""
    # Resident weights are single-buffered (pl.Buffered(1)); biases are f32.
    weight_bytes = itemsize * (cin_p * h_p + h_p * cout_p + cout_p * cin_p) \
        + 4 * (h_p + cout_p + cin_p)
    # Per-batch-row cost: double-buffered x tile + fused output tile + f32 temps.
    per_row = itemsize * (2 * cin_p + 2 * (cout_p + cin_p)) \
        + 4 * (h_p + cout_p + cin_p)
    avail = max(vmem_budget - weight_bytes, 8 * per_row)
    tm = int(avail // per_row)
    tm = max(sub, min(tm_cap, (tm // sub) * sub))
    tm = min(tm, _round_up(m, sub))
    return tm


def _mlp_kernel(x_ref, w1_ref, b1_ref, w2_ref, b2_ref, wae_ref, bae_ref,
                o_ref, *, cout_p):
    # x_ref:   [TM, Cin_p]           (compute dtype)
    # w1_ref:  [Cin_p, H_p]          (pre-transposed: in x out)
    # b1_ref:  [1, H_p]              (f32)
    # w2_ref:  [H_p, Cout_p]
    # b2_ref:  [1, Cout_p]           (f32)
    # wae_ref: [Cout_p, Cin_p]
    # bae_ref: [1, Cin_p]            (f32)
    # o_ref:   [TM, Cout_p + Cin_p]  fused slab: y | re_x
    cdt = x_ref.dtype
    x = x_ref[...]

    # layer1 + ReLU: MXU matmul with f32 accumulation; bias add on VPU in f32.
    h = jnp.dot(x, w1_ref[...], preferred_element_type=jnp.float32)
    h = jnp.maximum(h + b1_ref[...], 0.0)

    # layer2.
    y = jnp.dot(h.astype(cdt), w2_ref[...],
                preferred_element_type=jnp.float32) + b2_ref[...]

    # ae head consumes y cast to the compute dtype (matches the emitted y,
    # same chaining as the PyTorch module).
    re = jnp.dot(y.astype(cdt), wae_ref[...],
                 preferred_element_type=jnp.float32) + bae_ref[...]

    # Fused lane-dense writeback: one wide unmasked store stream.
    o_ref[:, :cout_p] = y.astype(o_ref.dtype)
    o_ref[:, cout_p:] = re.astype(o_ref.dtype)


@functools.partial(jax.jit, static_argnames=("tm", "compute_dtype"))
def mlp_forward(x, w1, b1, w2, b2, wae, bae, *, tm=None, compute_dtype=None):
    """Fused layer1+ReLU -> layer2 -> ae, returning (y, re_x)."""
    M, Cin = x.shape
    H = w1.shape[0]
    Cout = w2.shape[0]
    out_dtype = x.dtype
    cdt = jnp.dtype(compute_dtype) if compute_dtype is not None else jnp.dtype(out_dtype)
    itemsize = cdt.itemsize
    sub = max(8, 32 // itemsize)  # sublane minimum: 8 f32 / 16 bf16 / 32 int8

    # Pad channel dims to the 128-lane width (zero padding is exact for
    # matmul + bias + ReLU; padded lanes/rows are sliced off below).
    Cin_p = _round_up(Cin, 128)
    H_p = _round_up(H, 128)
    Cout_p = _round_up(Cout, 128)

    # Pre-transpose PyTorch [out, in] weights to [in, out], cast, zero-pad.
    w1_t = jnp.zeros((Cin_p, H_p), cdt).at[:Cin, :H].set(w1.T.astype(cdt))
    w2_t = jnp.zeros((H_p, Cout_p), cdt).at[:H, :Cout].set(w2.T.astype(cdt))
    wae_t = jnp.zeros((Cout_p, Cin_p), cdt).at[:Cout, :Cin].set(wae.T.astype(cdt))
    b1_p = jnp.zeros((1, H_p), jnp.float32).at[0, :H].set(b1.astype(jnp.float32))
    b2_p = jnp.zeros((1, Cout_p), jnp.float32).at[0, :Cout].set(b2.astype(jnp.float32))
    bae_p = jnp.zeros((1, Cin_p), jnp.float32).at[0, :Cin].set(bae.astype(jnp.float32))

    vmem_budget, vmem_cap = _vmem_params()
    if tm is None:
        tm = _pick_tm(M, Cin_p, H_p, Cout_p, itemsize, sub, vmem_budget)
    # Guarantee >= 2 grid steps when M allows it so v7x can shard the
    # "parallel" batch axis across both TensorCores (no-op on 1-TC chips).
    if _round_up(M, tm) // tm < 2 and M >= 2 * sub:
        tm = min(tm, _round_up(-(-M // 2), sub))

    Mp = _round_up(max(M, tm), tm)
    x_p = jnp.zeros((Mp, Cin_p), cdt).at[:M, :Cin].set(x.astype(cdt))

    grid = (Mp // tm,)

    # VMEM estimate: single-buffered weights + double-buffered x / fused output
    # streams + f32 intermediates, plus fixed headroom (no 2x hedge).
    weight_bytes = itemsize * (Cin_p * H_p + H_p * Cout_p + Cout_p * Cin_p) \
        + 4 * (H_p + Cout_p + Cin_p)
    stream_bytes = 2 * tm * itemsize * (Cin_p + (Cout_p + Cin_p))
    temp_bytes = 4 * tm * (H_p + Cout_p + Cin_p)
    est_bytes = weight_bytes + stream_bytes + temp_bytes
    vmem_limit = int(min(max(est_bytes + 8 * 2**20, 32 * 2**20), vmem_cap))

    resident = pl.Buffered(1)  # constant-index blocks: single buffer only

    out_p = pl.pallas_call(
        functools.partial(_mlp_kernel, cout_p=Cout_p),
        out_shape=jax.ShapeDtypeStruct((Mp, Cout_p + Cin_p), out_dtype),
        grid_spec=pltpu.PrefetchScalarGridSpec(
            num_scalar_prefetch=0,
            grid=grid,
            in_specs=[
                pl.BlockSpec((tm, Cin_p), lambda i: (i, 0)),                              # x (streamed)
                pl.BlockSpec((Cin_p, H_p), lambda i: (0, 0), pipeline_mode=resident),     # W1^T
                pl.BlockSpec((1, H_p), lambda i: (0, 0), pipeline_mode=resident),         # b1
                pl.BlockSpec((H_p, Cout_p), lambda i: (0, 0), pipeline_mode=resident),    # W2^T
                pl.BlockSpec((1, Cout_p), lambda i: (0, 0), pipeline_mode=resident),      # b2
                pl.BlockSpec((Cout_p, Cin_p), lambda i: (0, 0), pipeline_mode=resident),  # Wae^T
                pl.BlockSpec((1, Cin_p), lambda i: (0, 0), pipeline_mode=resident),       # bae
            ],
            out_specs=pl.BlockSpec((tm, Cout_p + Cin_p), lambda i: (i, 0)),               # [y | re_x]
        ),
        compiler_params=pltpu.CompilerParams(
            dimension_semantics=("parallel",),
            vmem_limit_bytes=vmem_limit,
        ),
    )(x_p, w1_t, b1_p, w2_t, b2_p, wae_t, bae_p)

    # Split the fused slab and slice padded lanes / rows back off.
    y = out_p[:M, :Cout]
    re_x = out_p[:M, Cout_p:Cout_p + Cin]
    return y, re_x


def init_linear_params(key, in_features, out_features, dtype=jnp.float32):
    """Deterministic init mimicking torch.nn.Linear (uniform +/- 1/sqrt(fan_in))."""
    kw, kb = jax.random.split(key)
    bound = 1.0 / jnp.sqrt(jnp.asarray(in_features, dtype))
    w = jax.random.uniform(kw, (out_features, in_features), dtype,
                           minval=-bound, maxval=bound)
    b = jax.random.uniform(kb, (out_features,), dtype,
                           minval=-bound, maxval=bound)
    return w, b


if __name__ == "__main__":
    input_dim, hidden_dim, output_dim = 32, 64, 16
    batch = 8

    key = jax.random.PRNGKey(0)
    kx, k1, k2, k3 = jax.random.split(key, 4)

    x = jax.random.normal(kx, (batch, input_dim), jnp.float32)
    w1, b1 = init_linear_params(k1, input_dim, hidden_dim)      # layer1
    w2, b2 = init_linear_params(k2, hidden_dim, output_dim)     # layer2
    wae, bae = init_linear_params(k3, output_dim, input_dim)    # ae

    # f32 path.
    y, re_x = mlp_forward(x, w1, b1, w2, b2, wae, bae)
    jax.block_until_ready((y, re_x))

    # Pure-JAX reference (same semantics as the PyTorch module).
    h_ref = jnp.maximum(x @ w1.T + b1, 0.0)
    y_ref = h_ref @ w2.T + b2
    re_ref = y_ref @ wae.T + bae

    assert y.shape == (batch, output_dim)
    assert re_x.shape == (batch, input_dim)
    assert jnp.allclose(y, y_ref, atol=1e-4, rtol=1e-4)
    assert jnp.allclose(re_x, re_ref, atol=1e-4, rtol=1e-4)

    # Optional bf16 streaming/compute path (f32 accumulation + f32 bias adds).
    y16, re16 = mlp_forward(x, w1, b1, w2, b2, wae, bae,
                            compute_dtype=jnp.bfloat16)
    jax.block_until_ready((y16, re16))
    assert y16.shape == (batch, output_dim)
    assert re16.shape == (batch, input_dim)
    assert jnp.allclose(y16, y_ref, atol=1e-1, rtol=1e-1)
    assert jnp.allclose(re16, re_ref, atol=1e-1, rtol=1e-1)

    print("KERNEL_OK")
</pallas_src>

<mosaic_0001>
module attributes {stable_mosaic.version = 11 : i64} {
  func.func @_mlp_kernel(%arg0: i32, %arg1: memref<8x128xf32, #tpu.memory_space<vmem>>, %arg2: memref<128x128xf32, #tpu.memory_space<vmem>>, %arg3: memref<1x128xf32, #tpu.memory_space<vmem>>, %arg4: memref<128x128xf32, #tpu.memory_space<vmem>>, %arg5: memref<1x128xf32, #tpu.memory_space<vmem>>, %arg6: memref<128x128xf32, #tpu.memory_space<vmem>>, %arg7: memref<1x128xf32, #tpu.memory_space<vmem>>, %arg8: memref<8x256xf32, #tpu.memory_space<vmem>>) attributes {dimension_semantics = [#tpu.dimension_semantics<parallel>], iteration_bounds = array<i64: 1>, scalar_prefetch = 0 : i64, scratch_operands = 0 : i64, tpu.core_type = #tpu.core_type<tc>, window_params = [{transform_indices = @transform_0, window_bounds = array<i64: 8, 128>}, {pipeline_mode = #tpu.pipeline_mode<synchronous>, transform_indices = @transform_1, window_bounds = array<i64: 128, 128>}, {pipeline_mode = #tpu.pipeline_mode<synchronous>, transform_indices = @transform_2, window_bounds = array<i64: 1, 128>}, {pipeline_mode = #tpu.pipeline_mode<synchronous>, transform_indices = @transform_3, window_bounds = array<i64: 128, 128>}, {pipeline_mode = #tpu.pipeline_mode<synchronous>, transform_indices = @transform_4, window_bounds = array<i64: 1, 128>}, {pipeline_mode = #tpu.pipeline_mode<synchronous>, transform_indices = @transform_5, window_bounds = array<i64: 128, 128>}, {pipeline_mode = #tpu.pipeline_mode<synchronous>, transform_indices = @transform_6, window_bounds = array<i64: 1, 128>}, {transform_indices = @transform_7, window_bounds = array<i64: 8, 256>}]} {
    %c0 = arith.constant 0 : index
    %c0_0 = arith.constant 0 : index
    %0 = vector.load %arg1[%c0, %c0_0] : memref<8x128xf32, #tpu.memory_space<vmem>>, vector<8x128xf32>
    %c0_1 = arith.constant 0 : index
    %c0_2 = arith.constant 0 : index
    %1 = vector.load %arg2[%c0_1, %c0_2] : memref<128x128xf32, #tpu.memory_space<vmem>>, vector<128x128xf32>
    %cst = arith.constant dense<0.000000e+00> : vector<8x128xf32>
    %2 = tpu.matmul %0, %1, %cst {dimension_numbers = #tpu.dot_dimension_numbers<[1], [0], [0], [1], [0, 0, 1, 1], [], []>} : vector<8x128xf32>, vector<128x128xf32>, vector<8x128xf32> -> vector<8x128xf32>
    %c0_3 = arith.constant 0 : index
    %c0_4 = arith.constant 0 : index
    %3 = vector.load %arg3[%c0_3, %c0_4] : memref<1x128xf32, #tpu.memory_space<vmem>>, vector<1x128xf32>
    %4 = vector.broadcast %3 : vector<1x128xf32> to vector<8x128xf32>
    %5 = arith.addf %2, %4 : vector<8x128xf32>
    %cst_5 = arith.constant 0.000000e+00 : f32
    %6 = vector.broadcast %cst_5 : f32 to vector<8x128xf32>
    %7 = arith.maximumf %5, %6 : vector<8x128xf32>
    %c0_6 = arith.constant 0 : index
    %c0_7 = arith.constant 0 : index
    %8 = vector.load %arg4[%c0_6, %c0_7] : memref<128x128xf32, #tpu.memory_space<vmem>>, vector<128x128xf32>
    %cst_8 = arith.constant dense<0.000000e+00> : vector<8x128xf32>
    %9 = tpu.matmul %7, %8, %cst_8 {dimension_numbers = #tpu.dot_dimension_numbers<[1], [0], [0], [1], [0, 0, 1, 1], [], []>} : vector<8x128xf32>, vector<128x128xf32>, vector<8x128xf32> -> vector<8x128xf32>
    %c0_9 = arith.constant 0 : index
    %c0_10 = arith.constant 0 : index
    %10 = vector.load %arg5[%c0_9, %c0_10] : memref<1x128xf32, #tpu.memory_space<vmem>>, vector<1x128xf32>
    %11 = vector.broadcast %10 : vector<1x128xf32> to vector<8x128xf32>
    %12 = arith.addf %9, %11 : vector<8x128xf32>
    %c0_11 = arith.constant 0 : index
    %c0_12 = arith.constant 0 : index
    %13 = vector.load %arg6[%c0_11, %c0_12] : memref<128x128xf32, #tpu.memory_space<vmem>>, vector<128x128xf32>
    %cst_13 = arith.constant dense<0.000000e+00> : vector<8x128xf32>
    %14 = tpu.matmul %12, %13, %cst_13 {dimension_numbers = #tpu.dot_dimension_numbers<[1], [0], [0], [1], [0, 0, 1, 1], [], []>} : vector<8x128xf32>, vector<128x128xf32>, vector<8x128xf32> -> vector<8x128xf32>
    %c0_14 = arith.constant 0 : index
    %c0_15 = arith.constant 0 : index
    %15 = vector.load %arg7[%c0_14, %c0_15] : memref<1x128xf32, #tpu.memory_space<vmem>>, vector<1x128xf32>
    %16 = vector.broadcast %15 : vector<1x128xf32> to vector<8x128xf32>
    %17 = arith.addf %14, %16 : vector<8x128xf32>
    %c0_16 = arith.constant 0 : index
    %c0_17 = arith.constant 0 : index
    %18 = vector.load %arg8[%c0_16, %c0_17] : memref<8x256xf32, #tpu.memory_space<vmem>>, vector<8x128xf32>
    tpu.vector_store %arg8[%c0_16, %c0_17], %12 {strides = array<i32>} : memref<8x256xf32, #tpu.memory_space<vmem>>, vector<8x128xf32>,
    %c0_18 = arith.constant 0 : index
    %c128 = arith.constant 128 : index
    %19 = vector.load %arg8[%c0_18, %c128] : memref<8x256xf32, #tpu.memory_space<vmem>>, vector<8x128xf32>
    tpu.vector_store %arg8[%c0_18, %c128], %17 {strides = array<i32>} : memref<8x256xf32, #tpu.memory_space<vmem>>, vector<8x128xf32>,
    return
  }
  func.func @transform_0(%arg0: i32) -> (i32, i32) {
    %c0_i32 = arith.constant 0 : i32
    %c0_i32_0 = arith.constant 0 : i32
    return %arg0, %c0_i32 : i32, i32
  }
  func.func @transform_1(%arg0: i32) -> (i32, i32) {
    %c0_i32 = arith.constant 0 : i32
    %c0_i32_0 = arith.constant 0 : i32
    %c0_i32_1 = arith.constant 0 : i32
    return %c0_i32, %c0_i32_0 : i32, i32
  }
  func.func @transform_2(%arg0: i32) -> (i32, i32) {
    %c0_i32 = arith.constant 0 : i32
    %c0_i32_0 = arith.constant 0 : i32
    %c0_i32_1 = arith.constant 0 : i32
    return %c0_i32, %c0_i32_0 : i32, i32
  }
  func.func @transform_3(%arg0: i32) -> (i32, i32) {
    %c0_i32 = arith.constant 0 : i32
    %c0_i32_0 = arith.constant 0 : i32
    %c0_i32_1 = arith.constant 0 : i32
    return %c0_i32, %c0_i32_0 : i32, i32
  }
  func.func @transform_4(%arg0: i32) -> (i32, i32) {
    %c0_i32 = arith.constant 0 : i32
    %c0_i32_0 = arith.constant 0 : i32
    %c0_i32_1 = arith.constant 0 : i32
    return %c0_i32, %c0_i32_0 : i32, i32
  }
  func.func @transform_5(%arg0: i32) -> (i32, i32) {
    %c0_i32 = arith.constant 0 : i32
    %c0_i32_0 = arith.constant 0 : i32
    %c0_i32_1 = arith.constant 0 : i32
    return %c0_i32, %c0_i32_0 : i32, i32
  }
  func.func @transform_6(%arg0: i32) -> (i32, i32) {
    %c0_i32 = arith.constant 0 : i32
    %c0_i32_0 = arith.constant 0 : i32
    %c0_i32_1 = arith.constant 0 : i32
    return %c0_i32, %c0_i32_0 : i32, i32
  }
  func.func @transform_7(%arg0: i32) -> (i32, i32) {
    %c0_i32 = arith.constant 0 : i32
    %c0_i32_0 = arith.constant 0 : i32
    return %arg0, %c0_i32 : i32, i32
  }
}

</mosaic_0001>

<llo_original>
// kernel: mlp_forward.1
$region0: #{mlp_forward.1}
  #allocation0 [shape = 'u32[]', space=smem, size = 0x4, offset = 0x4, fixed_abs, tag = 'smem constant byte address 0x4 - core index']
  #allocation1 [shape = 'u32[144,128]{1,0:T(1,128)}', space=vmem, size = 0x12000, scoped, tag = 'internal scratch']
  %s0 = inlined_call_operand.vmem [shape: f32[8,128], index: 0, kind: input, shape index: {}]
  %s1 = inlined_call_operand.vmem [shape: f32[128,128], index: 1, kind: input, shape index: {}]
  %s2 = inlined_call_operand.vmem [shape: f32[1,128], index: 2, kind: input, shape index: {}]
  %s3 = inlined_call_operand.vmem [shape: f32[128,128], index: 3, kind: input, shape index: {}]
  %s4 = inlined_call_operand.vmem [shape: f32[1,128], index: 4, kind: input, shape index: {}]
  %s5 = inlined_call_operand.vmem [shape: f32[128,128], index: 5, kind: input, shape index: {}]
  %s6 = inlined_call_operand.vmem [shape: f32[1,128], index: 6, kind: input, shape index: {}]
  %s7 = inlined_call_operand.vmem [shape: f32[8,256], index: 7, kind: output, shape index: {}]
  %s8 = sld [smem:[#allocation0]]
  $region38: #{mlp_forward.1} parent=0
    _
  %s10 = ssub.s32 1, %s8
  %s11 = scalar_select 0, %s10, %s8
  // Predicated region
  $region2: #{mlp_forward.1} parent=0 // pred_check
    _
  $region3: #{mlp_forward.1} parent=0 // pred_check_branch
    %13 = sbr.rel (0) target = $region5
  $region4: #{mlp_forward.1} parent=0 // pred_region
    _
  $region5: #{mlp_forward.1} parent=0 // pred_fallthru
    _
  // Predicated region
  $region6: #{mlp_forward.1} parent=0 // pred_check
    _
  $region7: #{mlp_forward.1} parent=0 // pred_check_branch
    %15 = sbr.rel (0) target = $region9
  $region8: #{mlp_forward.1} parent=0 // pred_region
    _
  $region9: #{mlp_forward.1} parent=0 // pred_fallthru
    _
  // Predicated region
  $region10: #{mlp_forward.1} parent=0 // pred_check
    _
  $region11: #{mlp_forward.1} parent=0 // pred_check_branch
    %17 = sbr.rel (0) target = $region13
  $region12: #{mlp_forward.1} parent=0 // pred_region
    _
  $region13: #{mlp_forward.1} parent=0 // pred_fallthru
    _
  // Predicated region
  $region14: #{mlp_forward.1} parent=0 // pred_check
    _
  $region15: #{mlp_forward.1} parent=0 // pred_check_branch
    %19 = sbr.rel (0) target = $region17
  $region16: #{mlp_forward.1} parent=0 // pred_region
    _
  $region17: #{mlp_forward.1} parent=0 // pred_fallthru
    _
  // Predicated region
  $region18: #{mlp_forward.1} parent=0 // pred_check
    _
  $region19: #{mlp_forward.1} parent=0 // pred_check_branch
    %21 = sbr.rel (0) target = $region21
  $region20: #{mlp_forward.1} parent=0 // pred_region
    _
  $region21: #{mlp_forward.1} parent=0 // pred_fallthru
    _
  // Predicated region
  $region22: #{mlp_forward.1} parent=0 // pred_check
    _
  $region23: #{mlp_forward.1} parent=0 // pred_check_branch
    %23 = sbr.rel (0) target = $region25
  $region24: #{mlp_forward.1} parent=0 // pred_region
    _
  $region25: #{mlp_forward.1} parent=0 // pred_fallthru
    _
  // Predicated region
  $region26: #{mlp_forward.1} parent=0 // pred_check
    _
  $region27: #{mlp_forward.1} parent=0 // pred_check_branch
    %25 = sbr.rel (0) target = $region29
  $region28: #{mlp_forward.1} parent=0 // pred_region
    _
  $region29: #{mlp_forward.1} parent=0 // pred_fallthru
    _
  %v26 = vld [vmem:[%s0] sm:$0xff]
  %v27 = vld [vmem:[%s1] sm:$0xff]
  %v28 = vld [vmem:[%s1 + $0x8] sm:$0xff]
  %v29 = vld [vmem:[%s1 + $0x10] sm:$0xff]
  %v30 = vld [vmem:[%s1 + $0x18] sm:$0xff]
  %v31 = vld [vmem:[%s1 + $0x20] sm:$0xff]
  %v32 = vld [vmem:[%s1 + $0x28] sm:$0xff]
  %v33 = vld [vmem:[%s1 + $0x30] sm:$0xff]
  %v34 = vld [vmem:[%s1 + $0x38] sm:$0xff]
  %v35 = vld [vmem:[%s1 + $0x40] sm:$0xff]
  %v36 = vld [vmem:[%s1 + $0x48] sm:$0xff]
  %v37 = vld [vmem:[%s1 + $0x50] sm:$0xff]
  %v38 = vld [vmem:[%s1 + $0x58] sm:$0xff]
  %v39 = vld [vmem:[%s1 + $0x60] sm:$0xff]
  %v40 = vld [vmem:[%s1 + $0x68] sm:$0xff]
  %v41 = vld [vmem:[%s1 + $0x70] sm:$0xff]
  %v42 = vld [vmem:[%s1 + $0x78] sm:$0xff]
  %v43 = vld [vmem:[%s2] sm:$0x1]
  %v45 = vlaneseq
  %v46 = vshrl.u32 %v45, 7
  %v47 = vsub.s32 0, %v46
  %v48 = vrot.slane %v43, %v47
  %50 = vmatprep.subr.mxu0 0.0
  %51 = vmatpush1.msra.mxu0 %v27
  %52 = vmatprep.subr.mxu0 0.0
  %53 = vmatpush1.msra.mxu0 %v28
  %54 = vmatprep.subr.mxu0 0.0
  %55 = vmatpush1.msra.mxu0 %v29
  %56 = vmatprep.subr.mxu0 0.0
  %57 = vmatpush1.msra.mxu0 %v30
  %58 = vmatprep.subr.mxu0 0.0
  %59 = vmatpush1.msra.mxu0 %v31
  %60 = vmatprep.subr.mxu0 0.0
  %61 = vmatpush1.msra.mxu0 %v32
  %62 = vmatprep.subr.mxu0 0.0
  %63 = vmatpush1.msra.mxu0 %v33
  %64 = vmatprep.subr.mxu0 0.0
  %65 = vmatpush1.msra.mxu0 %v34
  %66 = vmatprep.subr.mxu0 0.0
  %67 = vmatpush1.msra.mxu0 %v35
  %68 = vmatprep.subr.mxu0 0.0
  %69 = vmatpush1.msra.mxu0 %v36
  %70 = vmatprep.subr.mxu0 0.0
  %71 = vmatpush1.msra.mxu0 %v37
  %72 = vmatprep.subr.mxu0 0.0
  %73 = vmatpush1.msra.mxu0 %v38
  %74 = vmatprep.subr.mxu0 0.0
  %75 = vmatpush1.msra.mxu0 %v39
  %76 = vmatprep.subr.mxu0 0.0
  %77 = vmatpush1.msra.mxu0 %v40
  %78 = vmatprep.subr.mxu0 0.0
  %79 = vmatpush1.msra.mxu0 %v41
  %80 = vmatprep.subr.mxu0 0.0
  %81 = vmatpush1.msra.mxu0 %v42
  %82 = vmatprep.subr.mxu0 0.0
  %83 = vmatpush1.msra.mxu0 0.0
  %84 = vmatprep.subr.mxu0 0.0
  %85 = vmatpush1.msra.mxu0 0.0
  %86 = vmatprep.subr.mxu0 0.0
  %87 = vmatpush1.msra.mxu0 0.0
  %88 = vmatprep.subr.mxu0 0.0
  %89 = vmatpush1.msra.mxu0 0.0
  %90 = vmatprep.subr.mxu0 0.0
  %91 = vmatpush1.msra.mxu0 0.0
  %92 = vmatprep.subr.mxu0 0.0
  %93 = vmatpush1.msra.mxu0 0.0
  %94 = vmatprep.subr.mxu0 0.0
  %95 = vmatpush1.msra.mxu0 0.0
  %96 = vmatprep.subr.mxu0 0.0
  %97 = vmatpush1.msra.mxu0 0.0
  %98 = vmatprep.subr.mxu0 0.0
  %99 = vmatpush1.msra.mxu0 0.0
  %100 = vmatprep.subr.mxu0 0.0
  %101 = vmatpush1.msra.mxu0 0.0
  %102 = vmatprep.subr.mxu0 0.0
  %103 = vmatpush1.msra.mxu0 0.0
  %104 = vmatprep.subr.mxu0 0.0
  %105 = vmatpush1.msra.mxu0 0.0
  %106 = vmatprep.subr.mxu0 0.0
  %107 = vmatpush1.msra.mxu0 0.0
  %108 = vmatprep.subr.mxu0 0.0
  %109 = vmatpush1.msra.mxu0 0.0
  %110 = vmatprep.subr.mxu0 0.0
  %111 = vmatpush1.msra.mxu0 0.0
  %112 = vmatprep.subr.mxu0 0.0
  %113 = vmatpush1.msra.mxu0 0.0
  %114 = vmatprep.mubr.f32.mxu0 0.0
  %115 = vmatmul.mubr.f32.gmra.mrb[0].mxu0 %v26
  %v116 = vpop.f32.mrb[0].mxu0
  %v117 = vadd.f32 %v48, %v116
  %v118 = vpop.f32.mrb[0].mxu0
  %119 = vdwg.mxu0
  %v120 = vmax.f32 %v117, 0.0
  %v121 = vld [vmem:[%s3] sm:$0xff]
  %v122 = vld [vmem:[%s3 + $0x8] sm:$0xff]
  %v123 = vld [vmem:[%s3 + $0x10] sm:$0xff]
  %v124 = vld [vmem:[%s3 + $0x18] sm:$0xff]
  %v125 = vld [vmem:[%s3 + $0x20] sm:$0xff]
  %v126 = vld [vmem:[%s3 + $0x28] sm:$0xff]
  %v127 = vld [vmem:[%s3 + $0x30] sm:$0xff]
  %v128 = vld [vmem:[%s3 + $0x38] sm:$0xff]
  %v129 = vld [vmem:[%s3 + $0x40] sm:$0xff]
  %v130 = vld [vmem:[%s3 + $0x48] sm:$0xff]
  %v131 = vld [vmem:[%s3 + $0x50] sm:$0xff]
  %v132 = vld [vmem:[%s3 + $0x58] sm:$0xff]
  %v133 = vld [vmem:[%s3 + $0x60] sm:$0xff]
  %v134 = vld [vmem:[%s3 + $0x68] sm:$0xff]
  %v135 = vld [vmem:[%s3 + $0x70] sm:$0xff]
  %v136 = vld [vmem:[%s3 + $0x78] sm:$0xff]
  %v137 = vld [vmem:[%s4] sm:$0x1]
  %v139 = vlaneseq
  %v140 = vshrl.u32 %v139, 7
  %v141 = vsub.s32 0, %v140
  %v142 = vrot.slane %v137, %v141
  %144 = vmatprep.subr.mxu0 0.0
  %145 = vmatpush1.msra.mxu0 %v121
  %146 = vmatprep.subr.mxu0 0.0
  %147 = vmatpush1.msra.mxu0 %v122
  %148 = vmatprep.subr.mxu0 0.0
  %149 = vmatpush1.msra.mxu0 %v123
  %150 = vmatprep.subr.mxu0 0.0
  %151 = vmatpush1.msra.mxu0 %v124
  %152 = vmatprep.subr.mxu0 0.0
  %153 = vmatpush1.msra.mxu0 %v125
  %154 = vmatprep.subr.mxu0 0.0
  %155 = vmatpush1.msra.mxu0 %v126
  %156 = vmatprep.subr.mxu0 0.0
  %157 = vmatpush1.msra.mxu0 %v127
  %158 = vmatprep.subr.mxu0 0.0
  %159 = vmatpush1.msra.mxu0 %v128
  %160 = vmatprep.subr.mxu0 0.0
  %161 = vmatpush1.msra.mxu0 %v129
  %162 = vmatprep.subr.mxu0 0.0
  %163 = vmatpush1.msra.mxu0 %v130
  %164 = vmatprep.subr.mxu0 0.0
  %165 = vmatpush1.msra.mxu0 %v131
  %166 = vmatprep.subr.mxu0 0.0
  %167 = vmatpush1.msra.mxu0 %v132
  %168 = vmatprep.subr.mxu0 0.0
  %169 = vmatpush1.msra.mxu0 %v133
  %170 = vmatprep.subr.mxu0 0.0
  %171 = vmatpush1.msra.mxu0 %v134
  %172 = vmatprep.subr.mxu0 0.0
  %173 = vmatpush1.msra.mxu0 %v135
  %174 = vmatprep.subr.mxu0 0.0
  %175 = vmatpush1.msra.mxu0 %v136
  %176 = vmatprep.subr.mxu0 0.0
  %177 = vmatpush1.msra.mxu0 0.0
  %178 = vmatprep.subr.mxu0 0.0
  %179 = vmatpush1.msra.mxu0 0.0
  %180 = vmatprep.subr.mxu0 0.0
  %181 = vmatpush1.msra.mxu0 0.0
  %182 = vmatprep.subr.mxu0 0.0
  %183 = vmatpush1.msra.mxu0 0.0
  %184 = vmatprep.subr.mxu0 0.0
  %185 = vmatpush1.msra.mxu0 0.0
  %186 = vmatprep.subr.mxu0 0.0
  %187 = vmatpush1.msra.mxu0 0.0
  %188 = vmatprep.subr.mxu0 0.0
  %189 = vmatpush1.msra.mxu0 0.0
  %190 = vmatprep.subr.mxu0 0.0
  %191 = vmatpush1.msra.mxu0 0.0
  %192 = vmatprep.subr.mxu0 0.0
  %193 = vmatpush1.msra.mxu0 0.0
  %194 = vmatprep.subr.mxu0 0.0
  %195 = vmatpush1.msra.mxu0 0.0
  %196 = vmatprep.subr.mxu0 0.0
  %197 = vmatpush1.msra.mxu0 0.0
  %198 = vmatprep.subr.mxu0 0.0
  %199 = vmatpush1.msra.mxu0 0.0
  %200 = vmatprep.subr.mxu0 0.0
  %201 = vmatpush1.msra.mxu0 0.0
  %202 = vmatprep.subr.mxu0 0.0
  %203 = vmatpush1.msra.mxu0 0.0
  %204 = vmatprep.subr.mxu0 0.0
  %205 = vmatpush1.msra.mxu0 0.0
  %206 = vmatprep.subr.mxu0 0.0
  %207 = vmatpush1.msra.mxu0 0.0
  %208 = vmatprep.mubr.f32.mxu0 0.0
  %209 = vmatmul.mubr.f32.gmra.mrb[0].mxu0 %v120
  %v210 = vpop.f32.mrb[0].mxu0
  %v211 = vadd.f32 %v142, %v210
  %v212 = vpop.f32.mrb[0].mxu0
  %213 = vdwg.mxu0
  %v214 = vld [vmem:[%s5] sm:$0xff]
  %v215 = vld [vmem:[%s5 + $0x8] sm:$0xff]
  %v216 = vld [vmem:[%s5 + $0x10] sm:$0xff]
  %v217 = vld [vmem:[%s5 + $0x18] sm:$0xff]
  %v218 = vld [vmem:[%s5 + $0x20] sm:$0xff]
  %v219 = vld [vmem:[%s5 + $0x28] sm:$0xff]
  %v220 = vld [vmem:[%s5 + $0x30] sm:$0xff]
  %v221 = vld [vmem:[%s5 + $0x38] sm:$0xff]
  %v222 = vld [vmem:[%s5 + $0x40] sm:$0xff]
  %v223 = vld [vmem:[%s5 + $0x48] sm:$0xff]
  %v224 = vld [vmem:[%s5 + $0x50] sm:$0xff]
  %v225 = vld [vmem:[%s5 + $0x58] sm:$0xff]
  %v226 = vld [vmem:[%s5 + $0x60] sm:$0xff]
  %v227 = vld [vmem:[%s5 + $0x68] sm:$0xff]
  %v228 = vld [vmem:[%s5 + $0x70] sm:$0xff]
  %v229 = vld [vmem:[%s5 + $0x78] sm:$0xff]
  %v230 = vld [vmem:[%s6] sm:$0x1]
  %v232 = vlaneseq
  %v233 = vshrl.u32 %v232, 7
  %v234 = vsub.s32 0, %v233
  %v235 = vrot.slane %v230, %v234
  %237 = vmatprep.subr.mxu0 0.0
  %238 = vmatpush1.msra.mxu0 %v214
  %239 = vmatprep.subr.mxu0 0.0
  %240 = vmatpush1.msra.mxu0 %v215
  %241 = vmatprep.subr.mxu0 0.0
  %242 = vmatpush1.msra.mxu0 %v216
  %243 = vmatprep.subr.mxu0 0.0
  %244 = vmatpush1.msra.mxu0 %v217
  %245 = vmatprep.subr.mxu0 0.0
  %246 = vmatpush1.msra.mxu0 %v218
  %247 = vmatprep.subr.mxu0 0.0
  %248 = vmatpush1.msra.mxu0 %v219
  %249 = vmatprep.subr.mxu0 0.0
  %250 = vmatpush1.msra.mxu0 %v220
  %251 = vmatprep.subr.mxu0 0.0
  %252 = vmatpush1.msra.mxu0 %v221
  %253 = vmatprep.subr.mxu0 0.0
  %254 = vmatpush1.msra.mxu0 %v222
  %255 = vmatprep.subr.mxu0 0.0
  %256 = vmatpush1.msra.mxu0 %v223
  %257 = vmatprep.subr.mxu0 0.0
  %258 = vmatpush1.msra.mxu0 %v224
  %259 = vmatprep.subr.mxu0 0.0
  %260 = vmatpush1.msra.mxu0 %v225
  %261 = vmatprep.subr.mxu0 0.0
  %262 = vmatpush1.msra.mxu0 %v226
  %263 = vmatprep.subr.mxu0 0.0
  %264 = vmatpush1.msra.mxu0 %v227
  %265 = vmatprep.subr.mxu0 0.0
  %266 = vmatpush1.msra.mxu0 %v228
  %267 = vmatprep.subr.mxu0 0.0
  %268 = vmatpush1.msra.mxu0 %v229
  %269 = vmatprep.subr.mxu0 0.0
  %270 = vmatpush1.msra.mxu0 0.0
  %271 = vmatprep.subr.mxu0 0.0
  %272 = vmatpush1.msra.mxu0 0.0
  %273 = vmatprep.subr.mxu0 0.0
  %274 = vmatpush1.msra.mxu0 0.0
  %275 = vmatprep.subr.mxu0 0.0
  %276 = vmatpush1.msra.mxu0 0.0
  %277 = vmatprep.subr.mxu0 0.0
  %278 = vmatpush1.msra.mxu0 0.0
  %279 = vmatprep.subr.mxu0 0.0
  %280 = vmatpush1.msra.mxu0 0.0
  %281 = vmatprep.subr.mxu0 0.0
  %282 = vmatpush1.msra.mxu0 0.0
  %283 = vmatprep.subr.mxu0 0.0
  %284 = vmatpush1.msra.mxu0 0.0
  %285 = vmatprep.subr.mxu0 0.0
  %286 = vmatpush1.msra.mxu0 0.0
  %287 = vmatprep.subr.mxu0 0.0
  %288 = vmatpush1.msra.mxu0 0.0
  %289 = vmatprep.subr.mxu0 0.0
  %290 = vmatpush1.msra.mxu0 0.0
  %291 = vmatprep.subr.mxu0 0.0
  %292 = vmatpush1.msra.mxu0 0.0
  %293 = vmatprep.subr.mxu0 0.0
  %294 = vmatpush1.msra.mxu0 0.0
  %295 = vmatprep.subr.mxu0 0.0
  %296 = vmatpush1.msra.mxu0 0.0
  %297 = vmatprep.subr.mxu0 0.0
  %298 = vmatpush1.msra.mxu0 0.0
  %299 = vmatprep.subr.mxu0 0.0
  %300 = vmatpush1.msra.mxu0 0.0
  %301 = vmatprep.mubr.f32.mxu0 0.0
  %302 = vmatmul.mubr.f32.gmra.mrb[0].mxu0 %v211
  %v303 = vpop.f32.mrb[0].mxu0
  %v304 = vadd.f32 %v235, %v303
  %v305 = vpop.f32.mrb[0].mxu0
  %306 = vdwg.mxu0
  %307 = vst [vmem:[%s7] sm:$0xff] %v211
  %308 = vst [vmem:[%s7 + $0x8] sm:$0xff] %v304
  // Predicated region
  $region30: #{mlp_forward.1} parent=0 // pred_check
    _
  $region31: #{mlp_forward.1} parent=0 // pred_check_branch
    %310 = sbr.rel (0) target = $region33
  $region32: #{mlp_forward.1} parent=0 // pred_region
    _
  $region33: #{mlp_forward.1} parent=0 // pred_fallthru
    _
  // Predicated region
  $region34: #{mlp_forward.1} parent=0 // pred_check
    _
  $region35: #{mlp_forward.1} parent=0 // pred_check_branch
    %312 = sbr.rel (0) target = $region37
  $region36: #{mlp_forward.1} parent=0 // pred_region
    _
  $region37: #{mlp_forward.1} parent=0 // pred_fallthru
    _

</llo_original>
